<compile_context>
chip_gen: v5e
topology: v5e:2x2
jax: 0.10.0
libtpu: 0.0.40
codegen_flags: <defaults>
</compile_context>

<pallas_src>
import functools

import jax
import jax.numpy as jnp
from jax.experimental import pallas as pl
from jax.experimental.pallas import tpu as pltpu

IN_DIM = 784
IN_PAD = 896      # 7 * 128 -> lane-dense reconstruction slab
LAT_PAD = 128     # latent slab padded to one full lane width


def _vae_kernel(
    x_ref,       # (TB, IN_PAD)    bf16, zero-padded cols >= 784
    w1_ref,      # (IN_PAD, H)     bf16  encoder_fc1 (padded rows are zero)
    b1_ref,      # (1, H)          f32
    wh_ref,      # (H, 2*LAT_PAD)  bf16  fused head: mu w in [:, :L], zlv w in [:, 128:128+L]
    bh_ref,      # (1, 2*LAT_PAD)  f32
    wd1_ref,     # (LAT_PAD, H)    bf16  decoder_fc1 (rows >= L are zero)
    bd1_ref,     # (1, H)          f32
    wd2_ref,     # (H, IN_PAD)     bf16  decoder_fc2 (padded cols are zero)
    bd2_ref,     # (1, IN_PAD)     f32
    eps_ref,     # (TB, LAT_PAD)   f32   reparameterization noise (cols >= L are zero)
    out_ref,     # (TB, IN_PAD)    f32   sigmoid reconstruction (lane-dense store)
    stats_ref,   # (TB, 2*LAT_PAD) f32   mu | z_log_var slab (lane-dense store)
):
    # --- encode ---
    h = jnp.dot(x_ref[...], w1_ref[...], preferred_element_type=jnp.float32) + b1_ref[...]
    h = jnp.maximum(h, 0.0)  # ReLU, kept f32 on the VPU side (v5e-safe)

    # fused mean / log-var head: one MXU push instead of two lane-starved ones
    stats = (jnp.dot(h.astype(jnp.bfloat16), wh_ref[...],
                     preferred_element_type=jnp.float32) + bh_ref[...])
    stats_ref[...] = stats  # unmasked (TB, 256) store; sliced into mu/zlv in wrapper

    mu = stats[:, :LAT_PAD]        # 128-aligned slices -> no cross-lane shuffles
    zlv = stats[:, LAT_PAD:]

    # --- reparameterize: z = mu + exp(0.5 * log_var) * eps ---
    # padded lanes: zlv = 0 -> std = 1, eps = 0 -> z = mu = 0 (and wd1 rows are zero anyway)
    z = mu + jnp.exp(0.5 * zlv) * eps_ref[...]

    # --- decode ---
    d = jnp.dot(z.astype(jnp.bfloat16), wd1_ref[...],
                preferred_element_type=jnp.float32) + bd1_ref[...]
    d = jnp.maximum(d, 0.0)  # ReLU
    logits = jnp.dot(d.astype(jnp.bfloat16), wd2_ref[...],
                     preferred_element_type=jnp.float32) + bd2_ref[...]
    out_ref[...] = jax.nn.sigmoid(logits)


def _round_up(n, m):
    return ((n + m - 1) // m) * m


def _pack_params(params, hidden_dim, latent_dim):
    """Pad / fuse / cast the (in, out)-stored f32 params into the kernel layout."""
    (w1, b1, wmu, bmu, wlv, blv, wd1, bd1, wd2, bd2) = params
    H, L = hidden_dim, latent_dim

    w1p = jnp.zeros((IN_PAD, H), jnp.float32).at[:IN_DIM].set(w1).astype(jnp.bfloat16)
    b1p = b1.reshape(1, H).astype(jnp.float32)

    wh = jnp.zeros((H, 2 * LAT_PAD), jnp.float32)
    wh = wh.at[:, :L].set(wmu).at[:, LAT_PAD:LAT_PAD + L].set(wlv).astype(jnp.bfloat16)
    bh = jnp.zeros((1, 2 * LAT_PAD), jnp.float32)
    bh = bh.at[:, :L].set(bmu.reshape(1, L)).at[:, LAT_PAD:LAT_PAD + L].set(blv.reshape(1, L))

    wd1p = jnp.zeros((LAT_PAD, H), jnp.float32).at[:L].set(wd1).astype(jnp.bfloat16)
    bd1p = bd1.reshape(1, H).astype(jnp.float32)

    wd2p = jnp.zeros((H, IN_PAD), jnp.float32).at[:, :IN_DIM].set(wd2).astype(jnp.bfloat16)
    bd2p = jnp.zeros((1, IN_PAD), jnp.float32).at[:, :IN_DIM].set(bd2.reshape(1, IN_DIM))

    return (w1p, b1p, wh, bh, wd1p, bd1p, wd2p, bd2p)


@functools.partial(jax.jit, static_argnames=("hidden_dim", "latent_dim"))
def vae_forward(x, params, eps, *, hidden_dim, latent_dim):
    """x: (B, C, H, W) NCHW image batch flattening to 784 features."""
    B = x.shape[0]
    x_flat = x.reshape(B, -1)
    assert x_flat.shape[1] == IN_DIM, "VAE expects inputs that flatten to 784 features"

    H, L = hidden_dim, latent_dim
    packed = _pack_params(params, H, L)

    # Batch tile: match MXU geometry at large batch, 8-sublane minimum at small batch.
    if B >= 256:
        TB = 256
    elif B >= 128:
        TB = 128
    else:
        TB = _round_up(B, 8)
    B_pad = _round_up(B, TB)
    n_tiles = B_pad // TB

    x_pad = (jnp.zeros((B_pad, IN_PAD), jnp.bfloat16)
             .at[:B, :IN_DIM].set(x_flat.astype(jnp.bfloat16)))
    eps_pad = (jnp.zeros((B_pad, LAT_PAD), jnp.float32)
               .at[:B, :L].set(eps.astype(jnp.float32)))

    def row_spec(cols):
        return pl.BlockSpec((TB, cols), lambda i: (i, 0))

    def const_spec(shape):
        # Same block every grid step -> weights stay resident in VMEM.
        return pl.BlockSpec(shape, lambda i: (0, 0))

    in_specs = [
        row_spec(IN_PAD),                     # x
        const_spec((IN_PAD, H)), const_spec((1, H)),               # encoder_fc1
        const_spec((H, 2 * LAT_PAD)), const_spec((1, 2 * LAT_PAD)),  # fused mean|log_var head
        const_spec((LAT_PAD, H)), const_spec((1, H)),              # decoder_fc1
        const_spec((H, IN_PAD)), const_spec((1, IN_PAD)),          # decoder_fc2
        row_spec(LAT_PAD),                    # eps
    ]
    out_specs = (row_spec(IN_PAD), row_spec(2 * LAT_PAD))
    out_shapes = (
        jax.ShapeDtypeStruct((B_pad, IN_PAD), jnp.float32),
        jax.ShapeDtypeStruct((B_pad, 2 * LAT_PAD), jnp.float32),
    )

    out_pad, stats = pl.pallas_call(
        _vae_kernel,
        out_shape=out_shapes,
        grid=(n_tiles,),
        in_specs=in_specs,
        out_specs=out_specs,
        compiler_params=pltpu.CompilerParams(dimension_semantics=("parallel",)),
    )(x_pad, *packed, eps_pad)

    output = out_pad[:B, :IN_DIM]
    mu = stats[:B, :L]
    z_log_var = stats[:B, LAT_PAD:LAT_PAD + L]
    return output, mu, z_log_var


def init_params(key, hidden_dim, latent_dim):
    """Deterministic synthetic parameters. Weights stored as (in, out)."""
    def linear(k, fan_in, fan_out):
        kw, kb = jax.random.split(k)
        bound = 1.0 / jnp.sqrt(fan_in)
        w = jax.random.uniform(kw, (fan_in, fan_out), jnp.float32, -bound, bound)
        b = jax.random.uniform(kb, (1, fan_out), jnp.float32, -bound, bound)
        return w, b

    k1, k2, k3, k4, k5 = jax.random.split(key, 5)
    w1, b1 = linear(k1, 784, hidden_dim)           # encoder_fc1
    wmu, bmu = linear(k2, hidden_dim, latent_dim)  # encoder_mean
    wlv, blv = linear(k3, hidden_dim, latent_dim)  # encoder_z_log_v
    wd1, bd1 = linear(k4, latent_dim, hidden_dim)  # decoder_fc1
    wd2, bd2 = linear(k5, hidden_dim, 784)         # decoder_fc2
    return (w1, b1, wmu, bmu, wlv, blv, wd1, bd1, wd2, bd2)


if __name__ == "__main__":
    hidden_dim, latent_dim = 32, 8
    batch = 2

    key = jax.random.PRNGKey(0)
    k_params, k_x, k_eps = jax.random.split(key, 3)

    params = init_params(k_params, hidden_dim, latent_dim)
    # MNIST-like NCHW input that flattens to 784 features.
    x = jax.random.uniform(k_x, (batch, 1, 28, 28), jnp.float32)
    eps = jax.random.normal(k_eps, (batch, latent_dim), jnp.float32)

    output, mu, z_log_var = vae_forward(
        x, params, eps, hidden_dim=hidden_dim, latent_dim=latent_dim)
    jax.block_until_ready((output, mu, z_log_var))

    # Pure-JAX f32 reference (same math, outside Pallas).
    (w1, b1, wmu, bmu, wlv, blv, wd1, bd1, wd2, bd2) = params
    xf = x.reshape(batch, -1)
    h = jnp.maximum(xf @ w1 + b1, 0.0)
    mu_ref = h @ wmu + bmu
    zlv_ref = h @ wlv + blv
    z = mu_ref + jnp.exp(0.5 * zlv_ref) * eps
    d = jnp.maximum(z @ wd1 + bd1, 0.0)
    out_ref = jax.nn.sigmoid(d @ wd2 + bd2)

    assert output.shape == (batch, 784)
    assert mu.shape == (batch, latent_dim)
    assert z_log_var.shape == (batch, latent_dim)
    # bf16 matmul operands vs. f32 reference -> loosened tolerance.
    assert jnp.allclose(output, out_ref, atol=3e-2), "reconstruction mismatch"
    assert jnp.allclose(mu, mu_ref, atol=3e-2), "mu mismatch"
    assert jnp.allclose(z_log_var, zlv_ref, atol=3e-2), "z_log_var mismatch"

    print("KERNEL_OK")
</pallas_src>

<mosaic_0001>
module attributes {stable_mosaic.version = 11 : i64} {
  func.func @_vae_kernel(%arg0: i32, %arg1: memref<8x896xbf16, #tpu.memory_space<vmem>>, %arg2: memref<896x32xbf16, #tpu.memory_space<vmem>>, %arg3: memref<1x32xf32, #tpu.memory_space<vmem>>, %arg4: memref<32x256xbf16, #tpu.memory_space<vmem>>, %arg5: memref<1x256xf32, #tpu.memory_space<vmem>>, %arg6: memref<128x32xbf16, #tpu.memory_space<vmem>>, %arg7: memref<1x32xf32, #tpu.memory_space<vmem>>, %arg8: memref<32x896xbf16, #tpu.memory_space<vmem>>, %arg9: memref<1x896xf32, #tpu.memory_space<vmem>>, %arg10: memref<8x128xf32, #tpu.memory_space<vmem>>, %arg11: memref<8x896xf32, #tpu.memory_space<vmem>>, %arg12: memref<8x256xf32, #tpu.memory_space<vmem>>) attributes {dimension_semantics = [#tpu.dimension_semantics<parallel>], iteration_bounds = array<i64: 1>, scalar_prefetch = 0 : i64, scratch_operands = 0 : i64, tpu.core_type = #tpu.core_type<tc>, window_params = [{transform_indices = @transform_0, window_bounds = array<i64: 8, 896>}, {pipeline_mode = #tpu.pipeline_mode<synchronous>, transform_indices = @transform_1, window_bounds = array<i64: 896, 32>}, {pipeline_mode = #tpu.pipeline_mode<synchronous>, transform_indices = @transform_2, window_bounds = array<i64: 1, 32>}, {pipeline_mode = #tpu.pipeline_mode<synchronous>, transform_indices = @transform_3, window_bounds = array<i64: 32, 256>}, {pipeline_mode = #tpu.pipeline_mode<synchronous>, transform_indices = @transform_4, window_bounds = array<i64: 1, 256>}, {pipeline_mode = #tpu.pipeline_mode<synchronous>, transform_indices = @transform_5, window_bounds = array<i64: 128, 32>}, {pipeline_mode = #tpu.pipeline_mode<synchronous>, transform_indices = @transform_6, window_bounds = array<i64: 1, 32>}, {pipeline_mode = #tpu.pipeline_mode<synchronous>, transform_indices = @transform_7, window_bounds = array<i64: 32, 896>}, {pipeline_mode = #tpu.pipeline_mode<synchronous>, transform_indices = @transform_8, window_bounds = array<i64: 1, 896>}, {transform_indices = @transform_9, window_bounds = array<i64: 8, 128>}, {transform_indices = @transform_10, window_bounds = array<i64: 8, 896>}, {transform_indices = @transform_11, window_bounds = array<i64: 8, 256>}]} {
    %c0 = arith.constant 0 : index
    %c0_0 = arith.constant 0 : index
    %0 = vector.load %arg1[%c0, %c0_0] : memref<8x896xbf16, #tpu.memory_space<vmem>>, vector<8x896xbf16>
    %c0_1 = arith.constant 0 : index
    %c0_2 = arith.constant 0 : index
    %1 = vector.load %arg2[%c0_1, %c0_2] : memref<896x32xbf16, #tpu.memory_space<vmem>>, vector<896x32xbf16>
    %cst = arith.constant dense<0.000000e+00> : vector<8x32xf32>
    %2 = tpu.matmul %0, %1, %cst {dimension_numbers = #tpu.dot_dimension_numbers<[1], [0], [0], [1], [0, 0, 1, 1], [], []>} : vector<8x896xbf16>, vector<896x32xbf16>, vector<8x32xf32> -> vector<8x32xf32>
    %c0_3 = arith.constant 0 : index
    %c0_4 = arith.constant 0 : index
    %3 = vector.load %arg3[%c0_3, %c0_4] : memref<1x32xf32, #tpu.memory_space<vmem>>, vector<1x32xf32>
    %4 = vector.broadcast %3 : vector<1x32xf32> to vector<8x32xf32>
    %5 = arith.addf %2, %4 : vector<8x32xf32>
    %cst_5 = arith.constant 0.000000e+00 : f32
    %6 = vector.broadcast %cst_5 : f32 to vector<8x32xf32>
    %7 = arith.maximumf %5, %6 : vector<8x32xf32>
    %8 = arith.truncf %7 : vector<8x32xf32> to vector<8x32xbf16>
    %c0_6 = arith.constant 0 : index
    %c0_7 = arith.constant 0 : index
    %9 = vector.load %arg4[%c0_6, %c0_7] : memref<32x256xbf16, #tpu.memory_space<vmem>>, vector<32x256xbf16>
    %cst_8 = arith.constant dense<0.000000e+00> : vector<8x256xf32>
    %10 = tpu.matmul %8, %9, %cst_8 {dimension_numbers = #tpu.dot_dimension_numbers<[1], [0], [0], [1], [0, 0, 1, 1], [], []>} : vector<8x32xbf16>, vector<32x256xbf16>, vector<8x256xf32> -> vector<8x256xf32>
    %c0_9 = arith.constant 0 : index
    %c0_10 = arith.constant 0 : index
    %11 = vector.load %arg5[%c0_9, %c0_10] : memref<1x256xf32, #tpu.memory_space<vmem>>, vector<1x256xf32>
    %12 = vector.broadcast %11 : vector<1x256xf32> to vector<8x256xf32>
    %13 = arith.addf %10, %12 : vector<8x256xf32>
    %c0_11 = arith.constant 0 : index
    %c0_12 = arith.constant 0 : index
    %14 = vector.load %arg12[%c0_11, %c0_12] : memref<8x256xf32, #tpu.memory_space<vmem>>, vector<8x256xf32>
    tpu.vector_store %arg12[%c0_11, %c0_12], %13 {strides = array<i32>} : memref<8x256xf32, #tpu.memory_space<vmem>>, vector<8x256xf32>,
    %15 = vector.extract_strided_slice %13 {offsets = [0, 0], sizes = [8, 128], strides = [1, 1]} : vector<8x256xf32> to vector<8x128xf32>
    %16 = vector.extract_strided_slice %13 {offsets = [0, 128], sizes = [8, 128], strides = [1, 1]} : vector<8x256xf32> to vector<8x128xf32>
    %cst_13 = arith.constant 5.000000e-01 : f32
    %17 = vector.broadcast %cst_13 : f32 to vector<8x128xf32>
    %18 = arith.mulf %17, %16 : vector<8x128xf32>
    %19 = math.exp %18 : vector<8x128xf32>
    %c0_14 = arith.constant 0 : index
    %c0_15 = arith.constant 0 : index
    %20 = vector.load %arg10[%c0_14, %c0_15] : memref<8x128xf32, #tpu.memory_space<vmem>>, vector<8x128xf32>
    %21 = arith.mulf %19, %20 : vector<8x128xf32>
    %22 = arith.addf %15, %21 : vector<8x128xf32>
    %23 = arith.truncf %22 : vector<8x128xf32> to vector<8x128xbf16>
    %c0_16 = arith.constant 0 : index
    %c0_17 = arith.constant 0 : index
    %24 = vector.load %arg6[%c0_16, %c0_17] : memref<128x32xbf16, #tpu.memory_space<vmem>>, vector<128x32xbf16>
    %cst_18 = arith.constant dense<0.000000e+00> : vector<8x32xf32>
    %25 = tpu.matmul %23, %24, %cst_18 {dimension_numbers = #tpu.dot_dimension_numbers<[1], [0], [0], [1], [0, 0, 1, 1], [], []>} : vector<8x128xbf16>, vector<128x32xbf16>, vector<8x32xf32> -> vector<8x32xf32>
    %c0_19 = arith.constant 0 : index
    %c0_20 = arith.constant 0 : index
    %26 = vector.load %arg7[%c0_19, %c0_20] : memref<1x32xf32, #tpu.memory_space<vmem>>, vector<1x32xf32>
    %27 = vector.broadcast %26 : vector<1x32xf32> to vector<8x32xf32>
    %28 = arith.addf %25, %27 : vector<8x32xf32>
    %cst_21 = arith.constant 0.000000e+00 : f32
    %29 = vector.broadcast %cst_21 : f32 to vector<8x32xf32>
    %30 = arith.maximumf %28, %29 : vector<8x32xf32>
    %31 = arith.truncf %30 : vector<8x32xf32> to vector<8x32xbf16>
    %c0_22 = arith.constant 0 : index
    %c0_23 = arith.constant 0 : index
    %32 = vector.load %arg8[%c0_22, %c0_23] : memref<32x896xbf16, #tpu.memory_space<vmem>>, vector<32x896xbf16>
    %cst_24 = arith.constant dense<0.000000e+00> : vector<8x896xf32>
    %33 = tpu.matmul %31, %32, %cst_24 {dimension_numbers = #tpu.dot_dimension_numbers<[1], [0], [0], [1], [0, 0, 1, 1], [], []>} : vector<8x32xbf16>, vector<32x896xbf16>, vector<8x896xf32> -> vector<8x896xf32>
    %c0_25 = arith.constant 0 : index
    %c0_26 = arith.constant 0 : index
    %34 = vector.load %arg9[%c0_25, %c0_26] : memref<1x896xf32, #tpu.memory_space<vmem>>, vector<1x896xf32>
    %35 = vector.broadcast %34 : vector<1x896xf32> to vector<8x896xf32>
    %36 = arith.addf %33, %35 : vector<8x896xf32>
    %37 = arith.negf %36 : vector<8x896xf32>
    %38 = math.exp %37 : vector<8x896xf32>
    %cst_27 = arith.constant 1.000000e+00 : f32
    %39 = vector.broadcast %cst_27 : f32 to vector<8x896xf32>
    %40 = arith.addf %39, %38 : vector<8x896xf32>
    %41 = arith.divf %39, %40 : vector<8x896xf32>
    %c0_28 = arith.constant 0 : index
    %c0_29 = arith.constant 0 : index
    %42 = vector.load %arg11[%c0_28, %c0_29] : memref<8x896xf32, #tpu.memory_space<vmem>>, vector<8x896xf32>
    tpu.vector_store %arg11[%c0_28, %c0_29], %41 {strides = array<i32>} : memref<8x896xf32, #tpu.memory_space<vmem>>, vector<8x896xf32>,
    return
  }
  func.func @transform_0(%arg0: i32) -> (i32, i32) {
    %c0_i32 = arith.constant 0 : i32
    %c0_i32_0 = arith.constant 0 : i32
    return %arg0, %c0_i32 : i32, i32
  }
  func.func @transform_1(%arg0: i32) -> (i32, i32) {
    %c0_i32 = arith.constant 0 : i32
    %c0_i32_0 = arith.constant 0 : i32
    %c0_i32_1 = arith.constant 0 : i32
    return %c0_i32, %c0_i32_0 : i32, i32
  }
  func.func @transform_2(%arg0: i32) -> (i32, i32) {
    %c0_i32 = arith.constant 0 : i32
    %c0_i32_0 = arith.constant 0 : i32
    %c0_i32_1 = arith.constant 0 : i32
    return %c0_i32, %c0_i32_0 : i32, i32
  }
  func.func @transform_3(%arg0: i32) -> (i32, i32) {
    %c0_i32 = arith.constant 0 : i32
    %c0_i32_0 = arith.constant 0 : i32
    %c0_i32_1 = arith.constant 0 : i32
    return %c0_i32, %c0_i32_0 : i32, i32
  }
  func.func @transform_4(%arg0: i32) -> (i32, i32) {
    %c0_i32 = arith.constant 0 : i32
    %c0_i32_0 = arith.constant 0 : i32
    %c0_i32_1 = arith.constant 0 : i32
    return %c0_i32, %c0_i32_0 : i32, i32
  }
  func.func @transform_5(%arg0: i32) -> (i32, i32) {
    %c0_i32 = arith.constant 0 : i32
    %c0_i32_0 = arith.constant 0 : i32
    %c0_i32_1 = arith.constant 0 : i32
    return %c0_i32, %c0_i32_0 : i32, i32
  }
  func.func @transform_6(%arg0: i32) -> (i32, i32) {
    %c0_i32 = arith.constant 0 : i32
    %c0_i32_0 = arith.constant 0 : i32
    %c0_i32_1 = arith.constant 0 : i32
    return %c0_i32, %c0_i32_0 : i32, i32
  }
  func.func @transform_7(%arg0: i32) -> (i32, i32) {
    %c0_i32 = arith.constant 0 : i32
    %c0_i32_0 = arith.constant 0 : i32
    %c0_i32_1 = arith.constant 0 : i32
    return %c0_i32, %c0_i32_0 : i32, i32
  }
  func.func @transform_8(%arg0: i32) -> (i32, i32) {
    %c0_i32 = arith.constant 0 : i32
    %c0_i32_0 = arith.constant 0 : i32
    %c0_i32_1 = arith.constant 0 : i32
    return %c0_i32, %c0_i32_0 : i32, i32
  }
  func.func @transform_9(%arg0: i32) -> (i32, i32) {
    %c0_i32 = arith.constant 0 : i32
    %c0_i32_0 = arith.constant 0 : i32
    return %arg0, %c0_i32 : i32, i32
  }
  func.func @transform_10(%arg0: i32) -> (i32, i32) {
    %c0_i32 = arith.constant 0 : i32
    %c0_i32_0 = arith.constant 0 : i32
    return %arg0, %c0_i32 : i32, i32
  }
  func.func @transform_11(%arg0: i32) -> (i32, i32) {
    %c0_i32 = arith.constant 0 : i32
    %c0_i32_0 = arith.constant 0 : i32
    return %arg0, %c0_i32 : i32, i32
  }
}

</mosaic_0001>

<llo_original>
// kernel: vae_forward.1
$region0: #{vae_forward.1}
  #allocation0 [shape = 'u32[]', space=smem, size = 0x4, offset = 0x4, fixed_abs, tag = 'smem constant byte address 0x4 - core index']
  #allocation1 [shape = 'u32[72,128]{1,0:T(1,128)}', space=vmem, size = 0x9000, scoped, tag = 'internal scratch']
  %s0 = inlined_call_operand.vmem [shape: bf16[8,896], index: 0, kind: input, shape index: {}]
  %s1 = inlined_call_operand.vmem [shape: bf16[896,32], index: 1, kind: input, shape index: {}]
  %s2 = inlined_call_operand.vmem [shape: f32[1,32], index: 2, kind: input, shape index: {}]
  %s3 = inlined_call_operand.vmem [shape: bf16[32,256], index: 3, kind: input, shape index: {}]
  %s4 = inlined_call_operand.vmem [shape: f32[1,256], index: 4, kind: input, shape index: {}]
  %s5 = inlined_call_operand.vmem [shape: bf16[128,32], index: 5, kind: input, shape index: {}]
  %s6 = inlined_call_operand.vmem [shape: f32[1,32], index: 6, kind: input, shape index: {}]
  %s7 = inlined_call_operand.vmem [shape: bf16[32,896], index: 7, kind: input, shape index: {}]
  %s8 = inlined_call_operand.vmem [shape: f32[1,896], index: 8, kind: input, shape index: {}]
  %s9 = inlined_call_operand.vmem [shape: f32[8,128], index: 9, kind: input, shape index: {}]
  %s10 = inlined_call_operand.vmem [shape: f32[8,896], index: 10, kind: output, shape index: {0}]
  %s11 = inlined_call_operand.vmem [shape: f32[8,256], index: 11, kind: output, shape index: {1}]
  %12 = xla_tuple %s10, %s11
  %s13 = sld [smem:[#allocation0]]
  $region58: #{vae_forward.1} parent=0
    _
  %s15 = ssub.s32 1, %s13
  %s16 = scalar_select 0, %s15, %s13
  // Predicated region
  $region2: #{vae_forward.1} parent=0 // pred_check
    _
  $region3: #{vae_forward.1} parent=0 // pred_check_branch
    %18 = sbr.rel (0) target = $region5
  $region4: #{vae_forward.1} parent=0 // pred_region
    _
  $region5: #{vae_forward.1} parent=0 // pred_fallthru
    _
  // Predicated region
  $region6: #{vae_forward.1} parent=0 // pred_check
    _
  $region7: #{vae_forward.1} parent=0 // pred_check_branch
    %20 = sbr.rel (0) target = $region9
  $region8: #{vae_forward.1} parent=0 // pred_region
    _
  $region9: #{vae_forward.1} parent=0 // pred_fallthru
    _
  // Predicated region
  $region10: #{vae_forward.1} parent=0 // pred_check
    _
  $region11: #{vae_forward.1} parent=0 // pred_check_branch
    %22 = sbr.rel (0) target = $region13
  $region12: #{vae_forward.1} parent=0 // pred_region
    _
  $region13: #{vae_forward.1} parent=0 // pred_fallthru
    _
  // Predicated region
  $region14: #{vae_forward.1} parent=0 // pred_check
    _
  $region15: #{vae_forward.1} parent=0 // pred_check_branch
    %24 = sbr.rel (0) target = $region17
  $region16: #{vae_forward.1} parent=0 // pred_region
    _
  $region17: #{vae_forward.1} parent=0 // pred_fallthru
    _
  // Predicated region
  $region18: #{vae_forward.1} parent=0 // pred_check
    _
  $region19: #{vae_forward.1} parent=0 // pred_check_branch
    %26 = sbr.rel (0) target = $region21
  $region20: #{vae_forward.1} parent=0 // pred_region
    _
  $region21: #{vae_forward.1} parent=0 // pred_fallthru
    _
  // Predicated region
  $region22: #{vae_forward.1} parent=0 // pred_check
    _
  $region23: #{vae_forward.1} parent=0 // pred_check_branch
    %28 = sbr.rel (0) target = $region25
  $region24: #{vae_forward.1} parent=0 // pred_region
    _
  $region25: #{vae_forward.1} parent=0 // pred_fallthru
    _
  // Predicated region
  $region26: #{vae_forward.1} parent=0 // pred_check
    _
  $region27: #{vae_forward.1} parent=0 // pred_check_branch
    %30 = sbr.rel (0) target = $region29
  $region28: #{vae_forward.1} parent=0 // pred_region
    _
  $region29: #{vae_forward.1} parent=0 // pred_fallthru
    _
  // Predicated region
  $region30: #{vae_forward.1} parent=0 // pred_check
    _
  $region31: #{vae_forward.1} parent=0 // pred_check_branch
    %32 = sbr.rel (0) target = $region33
  $region32: #{vae_forward.1} parent=0 // pred_region
    _
  $region33: #{vae_forward.1} parent=0 // pred_fallthru
    _
  // Predicated region
  $region34: #{vae_forward.1} parent=0 // pred_check
    _
  $region35: #{vae_forward.1} parent=0 // pred_check_branch
    %34 = sbr.rel (0) target = $region37
  $region36: #{vae_forward.1} parent=0 // pred_region
    _
  $region37: #{vae_forward.1} parent=0 // pred_fallthru
    _
  // Predicated region
  $region38: #{vae_forward.1} parent=0 // pred_check
    _
  $region39: #{vae_forward.1} parent=0 // pred_check_branch
    %36 = sbr.rel (0) target = $region41
  $region40: #{vae_forward.1} parent=0 // pred_region
    _
  $region41: #{vae_forward.1} parent=0 // pred_fallthru
    _
  %v38 = vld [vmem:[%s0] sm:$0xff]
  %v39 = vld [vmem:[%s0 + $0x8] sm:$0xff]
  %v40 = vld [vmem:[%s0 + $0x10] sm:$0xff]
  %v41 = vld [vmem:[%s0 + $0x18] sm:$0xf]
  %v42 = vld [vmem:[%s1] sm:$0xf]
  %v43 = vld [vmem:[%s1 + $0x4] sm:$0xf]
  %v44 = vld [vmem:[%s1 + $0x8] sm:$0xf]
  %v45 = vld [vmem:[%s1 + $0xc] sm:$0xf]
  %v46 = vld [vmem:[%s1 + $0x10] sm:$0xf]
  %v47 = vld [vmem:[%s1 + $0x14] sm:$0xf]
  %v48 = vld [vmem:[%s1 + $0x18] sm:$0xf]
  %v49 = vld [vmem:[%s1 + $0x1c] sm:$0xf]
  %v50 = vld [vmem:[%s1 + $0x20] sm:$0xf]
  %v51 = vld [vmem:[%s1 + $0x24] sm:$0xf]
  %v52 = vld [vmem:[%s1 + $0x28] sm:$0xf]
  %v53 = vld [vmem:[%s1 + $0x2c] sm:$0xf]
  %v54 = vld [vmem:[%s1 + $0x30] sm:$0xf]
  %v55 = vld [vmem:[%s1 + $0x34] sm:$0xf]
  %v56 = vld [vmem:[%s1 + $0x38] sm:$0xf]
  %v57 = vld [vmem:[%s1 + $0x3c] sm:$0xf]
  %v58 = vld [vmem:[%s1 + $0x40] sm:$0xf]
  %v59 = vld [vmem:[%s1 + $0x44] sm:$0xf]
  %v60 = vld [vmem:[%s1 + $0x48] sm:$0xf]
  %v61 = vld [vmem:[%s1 + $0x4c] sm:$0xf]
  %v62 = vld [vmem:[%s1 + $0x50] sm:$0xf]
  %v63 = vld [vmem:[%s1 + $0x54] sm:$0xf]
  %v64 = vld [vmem:[%s1 + $0x58] sm:$0xf]
  %v65 = vld [vmem:[%s1 + $0x5c] sm:$0xf]
  %v66 = vld [vmem:[%s1 + $0x60] sm:$0xf]
  %v67 = vld [vmem:[%s1 + $0x64] sm:$0xf]
  %v68 = vld [vmem:[%s1 + $0x68] sm:$0xf]
  %v69 = vld [vmem:[%s1 + $0x6c] sm:$0xf]
  %v70 = vld [vmem:[%s1 + $0x70] sm:$0xf]
  %v71 = vld [vmem:[%s1 + $0x74] sm:$0xf]
  %v72 = vld [vmem:[%s1 + $0x78] sm:$0xf]
  %v73 = vld [vmem:[%s1 + $0x7c] sm:$0xf]
  %v74 = vld [vmem:[%s1 + $0x80] sm:$0xf]
  %v75 = vld [vmem:[%s1 + $0x84] sm:$0xf]
  %v76 = vld [vmem:[%s1 + $0x88] sm:$0xf]
  %v77 = vld [vmem:[%s1 + $0x8c] sm:$0xf]
  %v78 = vld [vmem:[%s1 + $0x90] sm:$0xf]
  %v79 = vld [vmem:[%s1 + $0x94] sm:$0xf]
  %v80 = vld [vmem:[%s1 + $0x98] sm:$0xf]
  %v81 = vld [vmem:[%s1 + $0x9c] sm:$0xf]
  %v82 = vld [vmem:[%s1 + $0xa0] sm:$0xf]
  %v83 = vld [vmem:[%s1 + $0xa4] sm:$0xf]
  %v84 = vld [vmem:[%s1 + $0xa8] sm:$0xf]
  %v85 = vld [vmem:[%s1 + $0xac] sm:$0xf]
  %v86 = vld [vmem:[%s1 + $0xb0] sm:$0xf]
  %v87 = vld [vmem:[%s1 + $0xb4] sm:$0xf]
  %v88 = vld [vmem:[%s1 + $0xb8] sm:$0xf]
  %v89 = vld [vmem:[%s1 + $0xbc] sm:$0xf]
  %v90 = vld [vmem:[%s1 + $0xc0] sm:$0xf]
  %v91 = vld [vmem:[%s1 + $0xc4] sm:$0xf]
  %v92 = vld [vmem:[%s1 + $0xc8] sm:$0xf]
  %v93 = vld [vmem:[%s1 + $0xcc] sm:$0xf]
  %v94 = vld [vmem:[%s1 + $0xd0] sm:$0xf]
  %v95 = vld [vmem:[%s1 + $0xd4] sm:$0xf]
  %v96 = vld [vmem:[%s1 + $0xd8] sm:$0xf]
  %v97 = vld [vmem:[%s1 + $0xdc] sm:$0xf]
  %v98 = vld [vmem:[%s1 + $0xe0] sm:$0xf]
  %v99 = vld [vmem:[%s1 + $0xe4] sm:$0xf]
  %v100 = vld [vmem:[%s1 + $0xe8] sm:$0xf]
  %v101 = vld [vmem:[%s1 + $0xec] sm:$0xf]
  %v102 = vld [vmem:[%s1 + $0xf0] sm:$0xf]
  %v103 = vld [vmem:[%s1 + $0xf4] sm:$0xf]
  %v104 = vld [vmem:[%s1 + $0xf8] sm:$0xf]
  %v105 = vld [vmem:[%s1 + $0xfc] sm:$0xf]
  %v106 = vld [vmem:[%s1 + $0x100] sm:$0xf]
  %v107 = vld [vmem:[%s1 + $0x104] sm:$0xf]
  %v108 = vld [vmem:[%s1 + $0x108] sm:$0xf]
  %v109 = vld [vmem:[%s1 + $0x10c] sm:$0xf]
  %v110 = vld [vmem:[%s1 + $0x110] sm:$0xf]
  %v111 = vld [vmem:[%s1 + $0x114] sm:$0xf]
  %v112 = vld [vmem:[%s1 + $0x118] sm:$0xf]
  %v113 = vld [vmem:[%s1 + $0x11c] sm:$0xf]
  %v114 = vld [vmem:[%s1 + $0x120] sm:$0xf]
  %v115 = vld [vmem:[%s1 + $0x124] sm:$0xf]
  %v116 = vld [vmem:[%s1 + $0x128] sm:$0xf]
  %v117 = vld [vmem:[%s1 + $0x12c] sm:$0xf]
  %v118 = vld [vmem:[%s1 + $0x130] sm:$0xf]
  %v119 = vld [vmem:[%s1 + $0x134] sm:$0xf]
  %v120 = vld [vmem:[%s1 + $0x138] sm:$0xf]
  %v121 = vld [vmem:[%s1 + $0x13c] sm:$0xf]
  %v122 = vld [vmem:[%s1 + $0x140] sm:$0xf]
  %v123 = vld [vmem:[%s1 + $0x144] sm:$0xf]
  %v124 = vld [vmem:[%s1 + $0x148] sm:$0xf]
  %v125 = vld [vmem:[%s1 + $0x14c] sm:$0xf]
  %v126 = vld [vmem:[%s1 + $0x150] sm:$0xf]
  %v127 = vld [vmem:[%s1 + $0x154] sm:$0xf]
  %v128 = vld [vmem:[%s1 + $0x158] sm:$0xf]
  %v129 = vld [vmem:[%s1 + $0x15c] sm:$0xf]
  %v130 = vld [vmem:[%s1 + $0x160] sm:$0xf]
  %v131 = vld [vmem:[%s1 + $0x164] sm:$0xf]
  %v132 = vld [vmem:[%s1 + $0x168] sm:$0xf]
  %v133 = vld [vmem:[%s1 + $0x16c] sm:$0xf]
  %v134 = vld [vmem:[%s1 + $0x170] sm:$0xf]
  %v135 = vld [vmem:[%s1 + $0x174] sm:$0xf]
  %v136 = vld [vmem:[%s1 + $0x178] sm:$0xf]
  %v137 = vld [vmem:[%s1 + $0x17c] sm:$0xf]
  %v138 = vld [vmem:[%s1 + $0x180] sm:$0xf]
  %v139 = vld [vmem:[%s1 + $0x184] sm:$0xf]
  %v140 = vld [vmem:[%s1 + $0x188] sm:$0xf]
  %v141 = vld [vmem:[%s1 + $0x18c] sm:$0xf]
  %v142 = vld [vmem:[%s1 + $0x190] sm:$0xf]
  %v143 = vld [vmem:[%s1 + $0x194] sm:$0xf]
  %v144 = vld [vmem:[%s1 + $0x198] sm:$0xf]
  %v145 = vld [vmem:[%s1 + $0x19c] sm:$0xf]
  %v146 = vld [vmem:[%s1 + $0x1a0] sm:$0xf]
  %v147 = vld [vmem:[%s1 + $0x1a4] sm:$0xf]
  %v148 = vld [vmem:[%s1 + $0x1a8] sm:$0xf]
  %v149 = vld [vmem:[%s1 + $0x1ac] sm:$0xf]
  %v150 = vld [vmem:[%s1 + $0x1b0] sm:$0xf]
  %v151 = vld [vmem:[%s1 + $0x1b4] sm:$0xf]
  %v152 = vld [vmem:[%s1 + $0x1b8] sm:$0xf]
  %v153 = vld [vmem:[%s1 + $0x1bc] sm:$0xf]
  %v154 = vld [vmem:[%s2] sm:$0x1]
  %v156 = vperm.slane %v154, 0
  %v162 = vunpack.c.l.b16 %v38
  %v163 = vunpack.c.h.b16 %v38
  %v164 = vunpack.c.l.b16 %v39
  %v165 = vunpack.c.h.b16 %v39
  %v166 = vunpack.c.l.b16 %v40
  %v167 = vunpack.c.h.b16 %v40
  %v168 = vunpack.c.l.b16 %v41
  %v169 = vpack.c.b16 %v162, %v162
  %v170 = vpack.c.b16 %v163, %v163
  %v171 = vpack.c.b16 %v164, %v164
  %v172 = vpack.c.b16 %v165, %v165
  %v173 = vpack.c.b16 %v166, %v166
  %v174 = vpack.c.b16 %v167, %v167
  %v175 = vpack.c.b16 %v168, %v168
  %v295 = vunpack.c.l.b16 %v42
  %v296 = vunpack.c.l.b16 %v43
  %v297 = vunpack.c.l.b16 %v44
  %v298 = vunpack.c.l.b16 %v45
  %v299 = vunpack.c.l.b16 %v46
  %v300 = vunpack.c.l.b16 %v47
  %v301 = vunpack.c.l.b16 %v48
  %v302 = vunpack.c.l.b16 %v49
  %v303 = vunpack.c.l.b16 %v50
  %v304 = vunpack.c.l.b16 %v51
  %v305 = vunpack.c.l.b16 %v52
  %v306 = vunpack.c.l.b16 %v53
  %v307 = vunpack.c.l.b16 %v54
  %v308 = vunpack.c.l.b16 %v55
  %v309 = vunpack.c.l.b16 %v56
  %v310 = vunpack.c.l.b16 %v57
  %v311 = vunpack.c.l.b16 %v58
  %v312 = vunpack.c.l.b16 %v59
  %v313 = vunpack.c.l.b16 %v60
  %v314 = vunpack.c.l.b16 %v61
  %v315 = vunpack.c.l.b16 %v62
  %v316 = vunpack.c.l.b16 %v63
  %v317 = vunpack.c.l.b16 %v64
  %v318 = vunpack.c.l.b16 %v65
  %v319 = vunpack.c.l.b16 %v66
  %v320 = vunpack.c.l.b16 %v67
  %v321 = vunpack.c.l.b16 %v68
  %v322 = vunpack.c.l.b16 %v69
  %v323 = vunpack.c.l.b16 %v70
  %v324 = vunpack.c.l.b16 %v71
  %v325 = vunpack.c.l.b16 %v72
  %v326 = vunpack.c.l.b16 %v73
  %v327 = vunpack.c.l.b16 %v74
  %v328 = vunpack.c.l.b16 %v75
  %v329 = vunpack.c.l.b16 %v76
  %v330 = vunpack.c.l.b16 %v77
  %v331 = vunpack.c.l.b16 %v78
  %v332 = vunpack.c.l.b16 %v79
  %v333 = vunpack.c.l.b16 %v80
  %v334 = vunpack.c.l.b16 %v81
  %v335 = vunpack.c.l.b16 %v82
  %v336 = vunpack.c.l.b16 %v83
  %v337 = vunpack.c.l.b16 %v84
  %v338 = vunpack.c.l.b16 %v85
  %v339 = vunpack.c.l.b16 %v86
  %v340 = vunpack.c.l.b16 %v87
  %v341 = vunpack.c.l.b16 %v88
  %v342 = vunpack.c.l.b16 %v89
  %v343 = vunpack.c.l.b16 %v90
  %v344 = vunpack.c.l.b16 %v91
  %v345 = vunpack.c.l.b16 %v92
  %v346 = vunpack.c.l.b16 %v93
  %v347 = vunpack.c.l.b16 %v94
  %v348 = vunpack.c.l.b16 %v95
  %v349 = vunpack.c.l.b16 %v96
  %v350 = vunpack.c.l.b16 %v97
  %v351 = vunpack.c.l.b16 %v98
  %v352 = vunpack.c.l.b16 %v99
  %v353 = vunpack.c.l.b16 %v100
  %v354 = vunpack.c.l.b16 %v101
  %v355 = vunpack.c.l.b16 %v102
  %v356 = vunpack.c.l.b16 %v103
  %v357 = vunpack.c.l.b16 %v104
  %v358 = vunpack.c.l.b16 %v105
  %v359 = vunpack.c.l.b16 %v106
  %v360 = vunpack.c.l.b16 %v107
  %v361 = vunpack.c.l.b16 %v108
  %v362 = vunpack.c.l.b16 %v109
  %v363 = vunpack.c.l.b16 %v110
  %v364 = vunpack.c.l.b16 %v111
  %v365 = vunpack.c.l.b16 %v112
  %v366 = vunpack.c.l.b16 %v113
  %v367 = vunpack.c.l.b16 %v114
  %v368 = vunpack.c.l.b16 %v115
  %v369 = vunpack.c.l.b16 %v116
  %v370 = vunpack.c.l.b16 %v117
  %v371 = vunpack.c.l.b16 %v118
  %v372 = vunpack.c.l.b16 %v119
  %v373 = vunpack.c.l.b16 %v120
  %v374 = vunpack.c.l.b16 %v121
  %v375 = vunpack.c.l.b16 %v122
  %v376 = vunpack.c.l.b16 %v123
  %v377 = vunpack.c.l.b16 %v124
  %v378 = vunpack.c.l.b16 %v125
  %v379 = vunpack.c.l.b16 %v126
  %v380 = vunpack.c.l.b16 %v127
  %v381 = vunpack.c.l.b16 %v128
  %v382 = vunpack.c.l.b16 %v129
  %v383 = vunpack.c.l.b16 %v130
  %v384 = vunpack.c.l.b16 %v131
  %v385 = vunpack.c.l.b16 %v132
  %v386 = vunpack.c.l.b16 %v133
  %v387 = vunpack.c.l.b16 %v134
  %v388 = vunpack.c.l.b16 %v135
  %v389 = vunpack.c.l.b16 %v136
  %v390 = vunpack.c.l.b16 %v137
  %v391 = vunpack.c.l.b16 %v138
  %v392 = vunpack.c.l.b16 %v139
  %v393 = vunpack.c.l.b16 %v140
  %v394 = vunpack.c.l.b16 %v141
  %v395 = vunpack.c.l.b16 %v142
  %v396 = vunpack.c.l.b16 %v143
  %v397 = vunpack.c.l.b16 %v144
  %v398 = vunpack.c.l.b16 %v145
  %v399 = vunpack.c.l.b16 %v146
  %v400 = vunpack.c.l.b16 %v147
  %v401 = vunpack.c.l.b16 %v148
  %v402 = vunpack.c.l.b16 %v149
  %v403 = vunpack.c.l.b16 %v150
  %v404 = vunpack.c.l.b16 %v151
  %v405 = vunpack.c.l.b16 %v152
  %v406 = vunpack.c.l.b16 %v153
  %v407 = vpack.c.b16 %v296, %v295
  %v408 = vpack.c.b16 %v298, %v297
  %v409 = vpack.c.b16 %v300, %v299
  %v410 = vpack.c.b16 %v302, %v301
  %v411 = vpack.c.b16 %v304, %v303
  %v412 = vpack.c.b16 %v306, %v305
  %v413 = vpack.c.b16 %v308, %v307
  %v414 = vpack.c.b16 %v310, %v309
  %v415 = vpack.c.b16 %v312, %v311
  %v416 = vpack.c.b16 %v314, %v313
  %v417 = vpack.c.b16 %v316, %v315
  %v418 = vpack.c.b16 %v318, %v317
  %v419 = vpack.c.b16 %v320, %v319
  %v420 = vpack.c.b16 %v322, %v321
  %v421 = vpack.c.b16 %v324, %v323
  %v422 = vpack.c.b16 %v326, %v325
  %v423 = vpack.c.b16 %v328, %v327
  %v424 = vpack.c.b16 %v330, %v329
  %v425 = vpack.c.b16 %v332, %v331
  %v426 = vpack.c.b16 %v334, %v333
  %v427 = vpack.c.b16 %v336, %v335
  %v428 = vpack.c.b16 %v338, %v337
  %v429 = vpack.c.b16 %v340, %v339
  %v430 = vpack.c.b16 %v342, %v341
  %v431 = vpack.c.b16 %v344, %v343
  %v432 = vpack.c.b16 %v346, %v345
  %v433 = vpack.c.b16 %v348, %v347
  %v434 = vpack.c.b16 %v350, %v349
  %v435 = vpack.c.b16 %v352, %v351
  %v436 = vpack.c.b16 %v354, %v353
  %v437 = vpack.c.b16 %v356, %v355
  %v438 = vpack.c.b16 %v358, %v357
  %v439 = vpack.c.b16 %v360, %v359
  %v440 = vpack.c.b16 %v362, %v361
  %v441 = vpack.c.b16 %v364, %v363
  %v442 = vpack.c.b16 %v366, %v365
  %v443 = vpack.c.b16 %v368, %v367
  %v444 = vpack.c.b16 %v370, %v369
  %v445 = vpack.c.b16 %v372, %v371
  %v446 = vpack.c.b16 %v374, %v373
  %v447 = vpack.c.b16 %v376, %v375
  %v448 = vpack.c.b16 %v378, %v377
  %v449 = vpack.c.b16 %v380, %v379
  %v450 = vpack.c.b16 %v382, %v381
  %v451 = vpack.c.b16 %v384, %v383
  %v452 = vpack.c.b16 %v386, %v385
  %v453 = vpack.c.b16 %v388, %v387
  %v454 = vpack.c.b16 %v390, %v389
  %v455 = vpack.c.b16 %v392, %v391
  %v456 = vpack.c.b16 %v394, %v393
  %v457 = vpack.c.b16 %v396, %v395
  %v458 = vpack.c.b16 %v398, %v397
  %v459 = vpack.c.b16 %v400, %v399
  %v460 = vpack.c.b16 %v402, %v401
  %v461 = vpack.c.b16 %v404, %v403
  %v462 = vpack.c.b16 %v406, %v405
  %519 = vmatpush.bf16.msra.mxu0 %v414
  %520 = vmatpush.bf16.msra.mxu0 %v413
  %521 = vmatpush.bf16.msra.mxu0 %v412
  %522 = vmatpush.bf16.msra.mxu0 %v411
  %523 = vmatpush.bf16.msra.mxu0 %v410
  %524 = vmatpush.bf16.msra.mxu0 %v409
  %525 = vmatpush.bf16.msra.mxu0 %v408
  %526 = vmatpush.bf16.msra.mxu0 %v407
  %527 = vmatmul.bf16.gmra.mxu0 %v169
  %v528 = vpop.f32.mrf.mxu0
  %v529 = vadd.f32 %v156, %v528
  %v530 = vpop.f32.mrf.mxu0
  %531 = vdwg.mxu0
  %532 = vmatpush.bf16.msra.mxu0 %v422
  %533 = vmatpush.bf16.msra.mxu0 %v421
  %534 = vmatpush.bf16.msra.mxu0 %v420
  %535 = vmatpush.bf16.msra.mxu0 %v419
  %536 = vmatpush.bf16.msra.mxu0 %v418
  %537 = vmatpush.bf16.msra.mxu0 %v417
  %538 = vmatpush.bf16.msra.mxu0 %v416
  %539 = vmatpush.bf16.msra.mxu0 %v415
  %540 = vmatmul.bf16.gmra.mxu0 %v170
  %v541 = vpop.f32.mrf.mxu0
  %v542 = vadd.f32 %v529, %v541
  %v543 = vpop.f32.mrf.mxu0
  %544 = vdwg.mxu0
  %545 = vmatpush.bf16.msra.mxu0 %v430
  %546 = vmatpush.bf16.msra.mxu0 %v429
  %547 = vmatpush.bf16.msra.mxu0 %v428
  %548 = vmatpush.bf16.msra.mxu0 %v427
  %549 = vmatpush.bf16.msra.mxu0 %v426
  %550 = vmatpush.bf16.msra.mxu0 %v425
  %551 = vmatpush.bf16.msra.mxu0 %v424
  %552 = vmatpush.bf16.msra.mxu0 %v423
  %553 = vmatmul.bf16.gmra.mxu0 %v171
  %v554 = vpop.f32.mrf.mxu0
  %v555 = vadd.f32 %v542, %v554
  %v556 = vpop.f32.mrf.mxu0
  %557 = vdwg.mxu0
  %558 = vmatpush.bf16.msra.mxu0 %v438
  %559 = vmatpush.bf16.msra.mxu0 %v437
  %560 = vmatpush.bf16.msra.mxu0 %v436
  %561 = vmatpush.bf16.msra.mxu0 %v435
  %562 = vmatpush.bf16.msra.mxu0 %v434
  %563 = vmatpush.bf16.msra.mxu0 %v433
  %564 = vmatpush.bf16.msra.mxu0 %v432
  %565 = vmatpush.bf16.msra.mxu0 %v431
  %566 = vmatmul.bf16.gmra.mxu0 %v172
  %v567 = vpop.f32.mrf.mxu0
  %v568 = vadd.f32 %v555, %v567
  %v569 = vpop.f32.mrf.mxu0
  %570 = vdwg.mxu0
  %571 = vmatpush.bf16.msra.mxu0 %v446
  %572 = vmatpush.bf16.msra.mxu0 %v445
  %573 = vmatpush.bf16.msra.mxu0 %v444
  %574 = vmatpush.bf16.msra.mxu0 %v443
  %575 = vmatpush.bf16.msra.mxu0 %v442
  %576 = vmatpush.bf16.msra.mxu0 %v441
  %577 = vmatpush.bf16.msra.mxu0 %v440
  %578 = vmatpush.bf16.msra.mxu0 %v439
  %579 = vmatmul.bf16.gmra.mxu0 %v173
  %v580 = vpop.f32.mrf.mxu0
  %v581 = vadd.f32 %v568, %v580
  %v582 = vpop.f32.mrf.mxu0
  %583 = vdwg.mxu0
  %584 = vmatpush.bf16.msra.mxu0 %v454
  %585 = vmatpush.bf16.msra.mxu0 %v453
  %586 = vmatpush.bf16.msra.mxu0 %v452
  %587 = vmatpush.bf16.msra.mxu0 %v451
  %588 = vmatpush.bf16.msra.mxu0 %v450
  %589 = vmatpush.bf16.msra.mxu0 %v449
  %590 = vmatpush.bf16.msra.mxu0 %v448
  %591 = vmatpush.bf16.msra.mxu0 %v447
  %592 = vmatmul.bf16.gmra.mxu0 %v174
  %v593 = vpop.f32.mrf.mxu0
  %v594 = vadd.f32 %v581, %v593
  %v595 = vpop.f32.mrf.mxu0
  %596 = vdwg.mxu0
  %597 = vmatpush.bf16.msra.mxu0 %v462
  %598 = vmatpush.bf16.msra.mxu0 %v461
  %599 = vmatpush.bf16.msra.mxu0 %v460
  %600 = vmatpush.bf16.msra.mxu0 %v459
  %601 = vmatpush.bf16.msra.mxu0 %v458
  %602 = vmatpush.bf16.msra.mxu0 %v457
  %603 = vmatpush.bf16.msra.mxu0 %v456
  %604 = vmatpush.bf16.msra.mxu0 %v455
  %605 = vmatmul.bf16.gmra.mxu0 %v175
  %v606 = vpop.f32.mrf.mxu0
  %v607 = vadd.f32 %v594, %v606
  %v608 = vpop.f32.mrf.mxu0
  %609 = vdwg.mxu0
  %v610 = vmax.f32 %v607, 0.0
  %v611 = vpack.c.bf16 %v610, %v610
  %v612 = vld [vmem:[%s3] sm:$0xff]
  %v613 = vld [vmem:[%s3 + $0x8] sm:$0xff]
  %v614 = vld [vmem:[%s3 + $0x10] sm:$0xff]
  %v615 = vld [vmem:[%s3 + $0x18] sm:$0xff]
  %v616 = vld [vmem:[%s4] sm:$0x3]
  %v618 = vperm.slane %v616, 0
  %v619 = vperm.slane %v616, 1
  %v626 = vunpack.c.l.b16 %v612
  %v627 = vunpack.c.h.b16 %v612
  %v628 = vunpack.c.l.b16 %v613
  %v629 = vunpack.c.h.b16 %v613
  %v630 = vunpack.c.l.b16 %v614
  %v631 = vunpack.c.h.b16 %v614
  %v632 = vunpack.c.l.b16 %v615
  %v633 = vunpack.c.h.b16 %v615
  %v634 = vpack.c.b16 %v628, %v626
  %v635 = vpack.c.b16 %v629, %v627
  %v636 = vpack.c.b16 %v632, %v630
  %v637 = vpack.c.b16 %v633, %v631
  %vm642 = vcmask 261120
  %v644 = vsel %vm642, %v611, 0
  %646 = vmatpush.bf16.msra.mxu0 0
  %647 = vmatpush.bf16.msra.mxu0 0
  %648 = vmatpush.bf16.msra.mxu0 0
  %649 = vmatpush.bf16.msra.mxu0 0
  %650 = vmatpush.bf16.msra.mxu0 0
  %651 = vmatpush.bf16.msra.mxu0 0
  %652 = vmatpush.bf16.msra.mxu0 %v636
  %653 = vmatpush.bf16.msra.mxu0 %v634
  %654 = vmatmul.bf16.gmra.mxu0 %v644
  %v655 = vpop.f32.mrf.mxu0
  %v656 = vadd.f32 %v618, %v655
  %v657 = vpop.f32.mrf.mxu0
  %658 = vdwg.mxu0
  %659 = vmatpush.bf16.msra.mxu0 0
  %660 = vmatpush.bf16.msra.mxu0 0
  %661 = vmatpush.bf16.msra.mxu0 0
  %662 = vmatpush.bf16.msra.mxu0 0
  %663 = vmatpush.bf16.msra.mxu0 0
  %664 = vmatpush.bf16.msra.mxu0 0
  %665 = vmatpush.bf16.msra.mxu0 %v637
  %666 = vmatpush.bf16.msra.mxu0 %v635
  %667 = vmatmul.bf16.gmra.mxu0 %v644
  %v668 = vpop.f32.mrf.mxu0
  %v669 = vadd.f32 %v619, %v668
  %v670 = vpop.f32.mrf.mxu0
  %671 = vdwg.mxu0
  %672 = vst [vmem:[%s11] sm:$0xff] %v656
  %673 = vst [vmem:[%s11 + $0x8] sm:$0xff] %v669
  %v674 = vmul.f32 %v669, 0.5
  %v675 = vmul.f32 %v674, 1.442695
  %v676 = vpow.pop %v675
  %v677 = vld [vmem:[%s9] sm:$0xff]
  %v678 = vmul.f32 %v676, %v677
  %v679 = vadd.f32 %v656, %v678
  %v680 = vpack.c.bf16 %v679, %v679
  %v681 = vld [vmem:[%s5] sm:$0xf]
  %v682 = vld [vmem:[%s5 + $0x4] sm:$0xf]
  %v683 = vld [vmem:[%s5 + $0x8] sm:$0xf]
  %v684 = vld [vmem:[%s5 + $0xc] sm:$0xf]
  %v685 = vld [vmem:[%s5 + $0x10] sm:$0xf]
  %v686 = vld [vmem:[%s5 + $0x14] sm:$0xf]
  %v687 = vld [vmem:[%s5 + $0x18] sm:$0xf]
  %v688 = vld [vmem:[%s5 + $0x1c] sm:$0xf]
  %v689 = vld [vmem:[%s5 + $0x20] sm:$0xf]
  %v690 = vld [vmem:[%s5 + $0x24] sm:$0xf]
  %v691 = vld [vmem:[%s5 + $0x28] sm:$0xf]
  %v692 = vld [vmem:[%s5 + $0x2c] sm:$0xf]
  %v693 = vld [vmem:[%s5 + $0x30] sm:$0xf]
  %v694 = vld [vmem:[%s5 + $0x34] sm:$0xf]
  %v695 = vld [vmem:[%s5 + $0x38] sm:$0xf]
  %v696 = vld [vmem:[%s5 + $0x3c] sm:$0xf]
  %v697 = vld [vmem:[%s6] sm:$0x1]
  %v699 = vperm.slane %v697, 0
  %v717 = vunpack.c.l.b16 %v681
  %v718 = vunpack.c.l.b16 %v682
  %v719 = vunpack.c.l.b16 %v683
  %v720 = vunpack.c.l.b16 %v684
  %v721 = vunpack.c.l.b16 %v685
  %v722 = vunpack.c.l.b16 %v686
  %v723 = vunpack.c.l.b16 %v687
  %v724 = vunpack.c.l.b16 %v688
  %v725 = vunpack.c.l.b16 %v689
  %v726 = vunpack.c.l.b16 %v690
  %v727 = vunpack.c.l.b16 %v691
  %v728 = vunpack.c.l.b16 %v692
  %v729 = vunpack.c.l.b16 %v693
  %v730 = vunpack.c.l.b16 %v694
  %v731 = vunpack.c.l.b16 %v695
  %v732 = vunpack.c.l.b16 %v696
  %v733 = vpack.c.b16 %v718, %v717
  %v734 = vpack.c.b16 %v720, %v719
  %v735 = vpack.c.b16 %v722, %v721
  %v736 = vpack.c.b16 %v724, %v723
  %v737 = vpack.c.b16 %v726, %v725
  %v738 = vpack.c.b16 %v728, %v727
  %v739 = vpack.c.b16 %v730, %v729
  %v740 = vpack.c.b16 %v732, %v731
  %749 = vmatpush.bf16.msra.mxu0 %v740
  %750 = vmatpush.bf16.msra.mxu0 %v739
  %751 = vmatpush.bf16.msra.mxu0 %v738
  %752 = vmatpush.bf16.msra.mxu0 %v737
  %753 = vmatpush.bf16.msra.mxu0 %v736
  %754 = vmatpush.bf16.msra.mxu0 %v735
  %755 = vmatpush.bf16.msra.mxu0 %v734
  %756 = vmatpush.bf16.msra.mxu0 %v733
  %757 = vmatmul.bf16.gmra.mxu0 %v680
  %v758 = vpop.f32.mrf.mxu0
  %v759 = vadd.f32 %v699, %v758
  %v760 = vpop.f32.mrf.mxu0
  %761 = vdwg.mxu0
  %v762 = vmax.f32 %v759, 0.0
  %v763 = vpack.c.bf16 %v762, %v762
  %v764 = vld [vmem:[%s7] sm:$0xff]
  %v765 = vld [vmem:[%s7 + $0x8] sm:$0xff]
  %v766 = vld [vmem:[%s7 + $0x10] sm:$0xff]
  %v767 = vld [vmem:[%s7 + $0x18] sm:$0xf]
  %v768 = vld [vmem:[%s7 + $0x1c] sm:$0xff]
  %v769 = vld [vmem:[%s7 + $0x24] sm:$0xff]
  %v770 = vld [vmem:[%s7 + $0x2c] sm:$0xff]
  %v771 = vld [vmem:[%s7 + $0x34] sm:$0xf]
  %v772 = vld [vmem:[%s7 + $0x38] sm:$0xff]
  %v773 = vld [vmem:[%s7 + $0x40] sm:$0xff]
  %v774 = vld [vmem:[%s7 + $0x48] sm:$0xff]
  %v775 = vld [vmem:[%s7 + $0x50] sm:$0xf]
  %v776 = vld [vmem:[%s7 + $0x54] sm:$0xff]
  %v777 = vld [vmem:[%s7 + $0x5c] sm:$0xff]
  %v778 = vld [vmem:[%s7 + $0x64] sm:$0xff]
  %v779 = vld [vmem:[%s7 + $0x6c] sm:$0xf]
  %v780 = vld [vmem:[%s8] sm:$0xff]
  %v782 = vperm.slane %v780, 0
  %v783 = vperm.slane %v780, 1
  %v784 = vperm.slane %v780, 2
  %v785 = vperm.slane %v780, 3
  %v786 = vperm.slane %v780, 4
  %v787 = vperm.slane %v780, 5
  %v788 = vperm.slane %v780, 6
  %v812 = vunpack.c.l.b16 %v764
  %v813 = vunpack.c.h.b16 %v764
  %v814 = vunpack.c.l.b16 %v765
  %v815 = vunpack.c.h.b16 %v765
  %v816 = vunpack.c.l.b16 %v766
  %v817 = vunpack.c.h.b16 %v766
  %v818 = vunpack.c.l.b16 %v767
  %v819 = vunpack.c.l.b16 %v768
  %v820 = vunpack.c.h.b16 %v768
  %v821 = vunpack.c.l.b16 %v769
  %v822 = vunpack.c.h.b16 %v769
  %v823 = vunpack.c.l.b16 %v770
  %v824 = vunpack.c.h.b16 %v770
  %v825 = vunpack.c.l.b16 %v771
  %v826 = vunpack.c.l.b16 %v772
  %v827 = vunpack.c.h.b16 %v772
  %v828 = vunpack.c.l.b16 %v773
  %v829 = vunpack.c.h.b16 %v773
  %v830 = vunpack.c.l.b16 %v774
  %v831 = vunpack.c.h.b16 %v774
  %v832 = vunpack.c.l.b16 %v775
  %v833 = vunpack.c.l.b16 %v776
  %v834 = vunpack.c.h.b16 %v776
  %v835 = vunpack.c.l.b16 %v777
  %v836 = vunpack.c.h.b16 %v777
  %v837 = vunpack.c.l.b16 %v778
  %v838 = vunpack.c.h.b16 %v778
  %v839 = vunpack.c.l.b16 %v779
  %v840 = vpack.c.b16 %v819, %v812
  %v841 = vpack.c.b16 %v820, %v813
  %v842 = vpack.c.b16 %v821, %v814
  %v843 = vpack.c.b16 %v822, %v815
  %v844 = vpack.c.b16 %v823, %v816
  %v845 = vpack.c.b16 %v824, %v817
  %v846 = vpack.c.b16 %v825, %v818
  %v847 = vpack.c.b16 %v833, %v826
  %v848 = vpack.c.b16 %v834, %v827
  %v849 = vpack.c.b16 %v835, %v828
  %v850 = vpack.c.b16 %v836, %v829
  %v851 = vpack.c.b16 %v837, %v830
  %v852 = vpack.c.b16 %v838, %v831
  %v853 = vpack.c.b16 %v839, %v832
  %v869 = vsel %vm642, %v763, 0
  %871 = vmatpush.bf16.msra.mxu0 0
  %872 = vmatpush.bf16.msra.mxu0 0
  %873 = vmatpush.bf16.msra.mxu0 0
  %874 = vmatpush.bf16.msra.mxu0 0
  %875 = vmatpush.bf16.msra.mxu0 0
  %876 = vmatpush.bf16.msra.mxu0 0
  %877 = vmatpush.bf16.msra.mxu0 %v847
  %878 = vmatpush.bf16.msra.mxu0 %v840
  %879 = vmatmul.bf16.gmra.mxu0 %v869
  %v880 = vpop.f32.mrf.mxu0
  %v881 = vadd.f32 %v782, %v880
  %v882 = vpop.f32.mrf.mxu0
  %883 = vdwg.mxu0
  %884 = vmatpush.bf16.msra.mxu0 0
  %885 = vmatpush.bf16.msra.mxu0 0
  %886 = vmatpush.bf16.msra.mxu0 0
  %887 = vmatpush.bf16.msra.mxu0 0
  %888 = vmatpush.bf16.msra.mxu0 0
  %889 = vmatpush.bf16.msra.mxu0 0
  %890 = vmatpush.bf16.msra.mxu0 %v848
  %891 = vmatpush.bf16.msra.mxu0 %v841
  %892 = vmatmul.bf16.gmra.mxu0 %v869
  %v893 = vpop.f32.mrf.mxu0
  %v894 = vadd.f32 %v783, %v893
  %v895 = vpop.f32.mrf.mxu0
  %896 = vdwg.mxu0
  %897 = vmatpush.bf16.msra.mxu0 0
  %898 = vmatpush.bf16.msra.mxu0 0
  %899 = vmatpush.bf16.msra.mxu0 0
  %900 = vmatpush.bf16.msra.mxu0 0
  %901 = vmatpush.bf16.msra.mxu0 0
  %902 = vmatpush.bf16.msra.mxu0 0
  %903 = vmatpush.bf16.msra.mxu0 %v849
  %904 = vmatpush.bf16.msra.mxu0 %v842
  %905 = vmatmul.bf16.gmra.mxu0 %v869
  %v906 = vpop.f32.mrf.mxu0
  %v907 = vadd.f32 %v784, %v906
  %v908 = vpop.f32.mrf.mxu0
  %909 = vdwg.mxu0
  %910 = vmatpush.bf16.msra.mxu0 0
  %911 = vmatpush.bf16.msra.mxu0 0
  %912 = vmatpush.bf16.msra.mxu0 0
  %913 = vmatpush.bf16.msra.mxu0 0
  %914 = vmatpush.bf16.msra.mxu0 0
  %915 = vmatpush.bf16.msra.mxu0 0
  %916 = vmatpush.bf16.msra.mxu0 %v850
  %917 = vmatpush.bf16.msra.mxu0 %v843
  %918 = vmatmul.bf16.gmra.mxu0 %v869
  %v919 = vpop.f32.mrf.mxu0
  %v920 = vadd.f32 %v785, %v919
  %v921 = vpop.f32.mrf.mxu0
  %922 = vdwg.mxu0
  %923 = vmatpush.bf16.msra.mxu0 0
  %924 = vmatpush.bf16.msra.mxu0 0
  %925 = vmatpush.bf16.msra.mxu0 0
  %926 = vmatpush.bf16.msra.mxu0 0
  %927 = vmatpush.bf16.msra.mxu0 0
  %928 = vmatpush.bf16.msra.mxu0 0
  %929 = vmatpush.bf16.msra.mxu0 %v851
  %930 = vmatpush.bf16.msra.mxu0 %v844
  %931 = vmatmul.bf16.gmra.mxu0 %v869
  %v932 = vpop.f32.mrf.mxu0
  %v933 = vadd.f32 %v786, %v932
  %v934 = vpop.f32.mrf.mxu0
  %935 = vdwg.mxu0
  %936 = vmatpush.bf16.msra.mxu0 0
  %937 = vmatpush.bf16.msra.mxu0 0
  %938 = vmatpush.bf16.msra.mxu0 0
  %939 = vmatpush.bf16.msra.mxu0 0
  %940 = vmatpush.bf16.msra.mxu0 0
  %941 = vmatpush.bf16.msra.mxu0 0
  %942 = vmatpush.bf16.msra.mxu0 %v852
  %943 = vmatpush.bf16.msra.mxu0 %v845
  %944 = vmatmul.bf16.gmra.mxu0 %v869
  %v945 = vpop.f32.mrf.mxu0
  %v946 = vadd.f32 %v787, %v945
  %v947 = vpop.f32.mrf.mxu0
  %948 = vdwg.mxu0
  %949 = vmatpush.bf16.msra.mxu0 0
  %950 = vmatpush.bf16.msra.mxu0 0
  %951 = vmatpush.bf16.msra.mxu0 0
  %952 = vmatpush.bf16.msra.mxu0 0
  %953 = vmatpush.bf16.msra.mxu0 0
  %954 = vmatpush.bf16.msra.mxu0 0
  %955 = vmatpush.bf16.msra.mxu0 %v853
  %956 = vmatpush.bf16.msra.mxu0 %v846
  %957 = vmatmul.bf16.gmra.mxu0 %v869
  %v958 = vpop.f32.mrf.mxu0
  %v959 = vadd.f32 %v788, %v958
  %v960 = vpop.f32.mrf.mxu0
  %961 = vdwg.mxu0
  %v962 = vxor.u32 %v881, 2147483648
  %v963 = vxor.u32 %v894, 2147483648
  %v964 = vxor.u32 %v907, 2147483648
  %v965 = vxor.u32 %v920, 2147483648
  %v966 = vxor.u32 %v933, 2147483648
  %v967 = vxor.u32 %v946, 2147483648
  %v968 = vxor.u32 %v959, 2147483648
  %v969 = vmul.f32 %v962, 1.442695
  %v970 = vpow.pop %v969
  %v971 = vmul.f32 %v963, 1.442695
  %v972 = vpow.pop %v971
  %v973 = vmul.f32 %v964, 1.442695
  %v974 = vpow.pop %v973
  %v975 = vmul.f32 %v965, 1.442695
  %v976 = vpow.pop %v975
  %v977 = vmul.f32 %v966, 1.442695
  %v978 = vpow.pop %v977
  %v979 = vmul.f32 %v967, 1.442695
  %v980 = vpow.pop %v979
  %v981 = vmul.f32 %v968, 1.442695
  %v982 = vpow.pop %v981
  %v983 = vadd.f32 %v970, 1.0
  %v984 = vadd.f32 %v972, 1.0
  %v985 = vadd.f32 %v974, 1.0
  %v986 = vadd.f32 %v976, 1.0
  %v987 = vadd.f32 %v978, 1.0
  %v988 = vadd.f32 %v980, 1.0
  %v989 = vadd.f32 %v982, 1.0
  %v990 = vrcp.pop %v983
  %v991 = vmul.f32 %v983, %v990
  %v992 = vsub.f32 1.0, %v991
  %v993 = vmul.f32 %v990, %v992
  %v994 = vadd.f32 %v990, %v993
  %vm995 = vweird.f32 %v983
  %vm996 = vweird.f32 %v990
  %vm997 = vmor %vm995, %vm996
  %v998 = vsel %vm997, %v990, %v994
  %v999 = vand.u32 2147483647, %v983
  %vm1000 = vcmp.eq.f32.partialorder %v999, 8.507059e+37
  %v1001 = vand.u32 %v983, 2147483648
  %v1002 = vor.u32 1.1754944e-38, %v1001
  %v1003 = vsel %vm1000, %v1002, %v998
  %v1004 = vmul.f32 1.0, %v1003
  %v1005 = vrcp.pop %v984
  %v1006 = vmul.f32 %v984, %v1005
  %v1007 = vsub.f32 1.0, %v1006
  %v1008 = vmul.f32 %v1005, %v1007
  %v1009 = vadd.f32 %v1005, %v1008
  %vm1010 = vweird.f32 %v984
  %vm1011 = vweird.f32 %v1005
  %vm1012 = vmor %vm1010, %vm1011
  %v1013 = vsel %vm1012, %v1005, %v1009
  %v1014 = vand.u32 2147483647, %v984
  %vm1015 = vcmp.eq.f32.partialorder %v1014, 8.507059e+37
  %v1016 = vand.u32 %v984, 2147483648
  %v1017 = vor.u32 1.1754944e-38, %v1016
  %v1018 = vsel %vm1015, %v1017, %v1013
  %v1019 = vmul.f32 1.0, %v1018
  %v1020 = vrcp.pop %v985
  %v1021 = vmul.f32 %v985, %v1020
  %v1022 = vsub.f32 1.0, %v1021
  %v1023 = vmul.f32 %v1020, %v1022
  %v1024 = vadd.f32 %v1020, %v1023
  %vm1025 = vweird.f32 %v985
  %vm1026 = vweird.f32 %v1020
  %vm1027 = vmor %vm1025, %vm1026
  %v1028 = vsel %vm1027, %v1020, %v1024
  %v1029 = vand.u32 2147483647, %v985
  %vm1030 = vcmp.eq.f32.partialorder %v1029, 8.507059e+37
  %v1031 = vand.u32 %v985, 2147483648
  %v1032 = vor.u32 1.1754944e-38, %v1031
  %v1033 = vsel %vm1030, %v1032, %v1028
  %v1034 = vmul.f32 1.0, %v1033
  %v1035 = vrcp.pop %v986
  %v1036 = vmul.f32 %v986, %v1035
  %v1037 = vsub.f32 1.0, %v1036
  %v1038 = vmul.f32 %v1035, %v1037
  %v1039 = vadd.f32 %v1035, %v1038
  %vm1040 = vweird.f32 %v986
  %vm1041 = vweird.f32 %v1035
  %vm1042 = vmor %vm1040, %vm1041
  %v1043 = vsel %vm1042, %v1035, %v1039
  %v1044 = vand.u32 2147483647, %v986
  %vm1045 = vcmp.eq.f32.partialorder %v1044, 8.507059e+37
  %v1046 = vand.u32 %v986, 2147483648
  %v1047 = vor.u32 1.1754944e-38, %v1046
  %v1048 = vsel %vm1045, %v1047, %v1043
  %v1049 = vmul.f32 1.0, %v1048
  %v1050 = vrcp.pop %v987
  %v1051 = vmul.f32 %v987, %v1050
  %v1052 = vsub.f32 1.0, %v1051
  %v1053 = vmul.f32 %v1050, %v1052
  %v1054 = vadd.f32 %v1050, %v1053
  %vm1055 = vweird.f32 %v987
  %vm1056 = vweird.f32 %v1050
  %vm1057 = vmor %vm1055, %vm1056
  %v1058 = vsel %vm1057, %v1050, %v1054
  %v1059 = vand.u32 2147483647, %v987
  %vm1060 = vcmp.eq.f32.partialorder %v1059, 8.507059e+37
  %v1061 = vand.u32 %v987, 2147483648
  %v1062 = vor.u32 1.1754944e-38, %v1061
  %v1063 = vsel %vm1060, %v1062, %v1058
  %v1064 = vmul.f32 1.0, %v1063
  %v1065 = vrcp.pop %v988
  %v1066 = vmul.f32 %v988, %v1065
  %v1067 = vsub.f32 1.0, %v1066
  %v1068 = vmul.f32 %v1065, %v1067
  %v1069 = vadd.f32 %v1065, %v1068
  %vm1070 = vweird.f32 %v988
  %vm1071 = vweird.f32 %v1065
  %vm1072 = vmor %vm1070, %vm1071
  %v1073 = vsel %vm1072, %v1065, %v1069
  %v1074 = vand.u32 2147483647, %v988
  %vm1075 = vcmp.eq.f32.partialorder %v1074, 8.507059e+37
  %v1076 = vand.u32 %v988, 2147483648
  %v1077 = vor.u32 1.1754944e-38, %v1076
  %v1078 = vsel %vm1075, %v1077, %v1073
  %v1079 = vmul.f32 1.0, %v1078
  %v1080 = vrcp.pop %v989
  %v1081 = vmul.f32 %v989, %v1080
  %v1082 = vsub.f32 1.0, %v1081
  %v1083 = vmul.f32 %v1080, %v1082
  %v1084 = vadd.f32 %v1080, %v1083
  %vm1085 = vweird.f32 %v989
  %vm1086 = vweird.f32 %v1080
  %vm1087 = vmor %vm1085, %vm1086
  %v1088 = vsel %vm1087, %v1080, %v1084
  %v1089 = vand.u32 2147483647, %v989
  %vm1090 = vcmp.eq.f32.partialorder %v1089, 8.507059e+37
  %v1091 = vand.u32 %v989, 2147483648
  %v1092 = vor.u32 1.1754944e-38, %v1091
  %v1093 = vsel %vm1090, %v1092, %v1088
  %v1094 = vmul.f32 1.0, %v1093
  %1095 = vst [vmem:[%s10] sm:$0xff] %v1004
  %1096 = vst [vmem:[%s10 + $0x8] sm:$0xff] %v1019
  %1097 = vst [vmem:[%s10 + $0x10] sm:$0xff] %v1034
  %1098 = vst [vmem:[%s10 + $0x18] sm:$0xff] %v1049
  %1099 = vst [vmem:[%s10 + $0x20] sm:$0xff] %v1064
  %1100 = vst [vmem:[%s10 + $0x28] sm:$0xff] %v1079
  %1101 = vst [vmem:[%s10 + $0x30] sm:$0xff] %v1094
  // Predicated region
  $region42: #{vae_forward.1} parent=0 // pred_check
    _
  $region43: #{vae_forward.1} parent=0 // pred_check_branch
    %1103 = sbr.rel (0) target = $region45
  $region44: #{vae_forward.1} parent=0 // pred_region
    _
  $region45: #{vae_forward.1} parent=0 // pred_fallthru
    _
  // Predicated region
  $region46: #{vae_forward.1} parent=0 // pred_check
    _
  $region47: #{vae_forward.1} parent=0 // pred_check_branch
    %1105 = sbr.rel (0) target = $region49
  $region48: #{vae_forward.1} parent=0 // pred_region
    _
  $region49: #{vae_forward.1} parent=0 // pred_fallthru
    _
  // Predicated region
  $region50: #{vae_forward.1} parent=0 // pred_check
    _
  $region51: #{vae_forward.1} parent=0 // pred_check_branch
    %1107 = sbr.rel (0) target = $region53
  $region52: #{vae_forward.1} parent=0 // pred_region
    _
  $region53: #{vae_forward.1} parent=0 // pred_fallthru
    _
  // Predicated region
  $region54: #{vae_forward.1} parent=0 // pred_check
    _
  $region55: #{vae_forward.1} parent=0 // pred_check_branch
    %1109 = sbr.rel (0) target = $region57
  $region56: #{vae_forward.1} parent=0 // pred_region
    _
  $region57: #{vae_forward.1} parent=0 // pred_fallthru
    _

</llo_original>
